<compile_context>
chip_gen: v6e
topology: v6e:2x2x1
jax: 0.10.0
libtpu: 0.0.40
codegen_flags: <defaults>
</compile_context>

<pallas_src>
import jax
import jax.numpy as jnp
from jax.experimental import pallas as pl
from jax.experimental.pallas import tpu as pltpu


IN_FEATURES = 11
HIDDEN = 256
OUT_FEATURES = 4
OUT_PAD = 8  # tiny output dim padded to 8 (full-dim block, contiguous 32 B/row store)


def mlp_kernel(x_ref, w1_ref, b1_ref, w2_ref, b2_ref, o_ref):
    # x_ref: (tile, 11) f32    w1_ref: (11, 256) bf16   b1_ref: (1, 256) f32
    # w2_ref: (256, 8) bf16    b2_ref: (1, 8) f32       o_ref: (tile, 8) f32
    x = x_ref[...].astype(jnp.bfloat16)                    # in-kernel cast (VPU, hidden under DMA)
    h = jnp.dot(x, w1_ref[...], preferred_element_type=jnp.float32)   # MXU, f32 acc
    h = jnp.maximum(h + b1_ref[...], 0.0)                  # bias + ReLU in f32 (v5e: no bf16 VPU)
    z = jnp.dot(h.astype(jnp.bfloat16), w2_ref[...],
                preferred_element_type=jnp.float32)        # MXU, f32 acc
    z = jnp.maximum(z + b2_ref[...], -30.0)                # clamp: exp(-z) stays finite
    e = jnp.exp(-z)                                        # EUP
    o_ref[...] = pl.reciprocal(1.0 + e, approx=True)       # EUP vrcp -> sigmoid


def _round_up(a, m):
    return (a + m - 1) // m * m


def linear_dqn_net_forward(x, w1, b1, w2, b2, *, tile_b=2048):
    """x: (B, 11) f32; w1: (11, 256); b1: (1, 256); w2: (256, 4); b2: (1, 4)."""
    B, F = x.shape
    H = w1.shape[1]
    OUT = w2.shape[1]

    # Pad the 4-wide output to 8 columns (zero columns; sliced off afterwards).
    w2p = jnp.zeros((H, OUT_PAD), jnp.float32).at[:, :OUT].set(w2)
    b2p = jnp.zeros((1, OUT_PAD), jnp.float32).at[:, :OUT].set(b2)

    # Weights cast to bf16 once (tiny, one-time); biases stay f32. x stays f32 and
    # is cast inside the kernel — no extra host-side pass over the batch.
    w1b = w1.astype(jnp.bfloat16)
    w2b = w2p.astype(jnp.bfloat16)
    b1f = b1.astype(jnp.float32)
    b2f = b2p.astype(jnp.float32)
    xf = x.astype(jnp.float32)

    # Batch tile: whole batch if it fits in one tile (block == full dim is always
    # legal for the sublane rule); otherwise a multiple-of-16 tile with a ragged
    # last grid step handled by Pallas.
    tile_b = max(16, _round_up(tile_b, 16))
    tile = B if B <= tile_b else tile_b
    grid = (pl.cdiv(B, tile),)

    cost = pl.CostEstimate(
        flops=2 * B * (F * H + H * OUT_PAD),
        transcendentals=B * OUT_PAD,
        bytes_accessed=B * (F * 4 + OUT_PAD * 4),
    )

    out = pl.pallas_call(
        mlp_kernel,
        out_shape=jax.ShapeDtypeStruct((B, OUT_PAD), jnp.float32),
        grid=grid,
        in_specs=[
            pl.BlockSpec((tile, F), lambda i: (i, 0)),       # x streams along B
            pl.BlockSpec((F, H), lambda i: (0, 0)),          # weights: VMEM-resident
            pl.BlockSpec((1, H), lambda i: (0, 0)),
            pl.BlockSpec((H, OUT_PAD), lambda i: (0, 0)),
            pl.BlockSpec((1, OUT_PAD), lambda i: (0, 0)),
        ],
        out_specs=pl.BlockSpec((tile, OUT_PAD), lambda i: (i, 0)),
        compiler_params=pltpu.CompilerParams(
            dimension_semantics=("parallel",),
            vmem_limit_bytes=32 << 20,
        ),
        cost_estimate=cost,
    )(xf, w1b, b1f, w2b, b2f)

    return out[:, :OUT]


def init_params(key):
    # Deterministic synthetic init (matches PyTorch Linear's uniform ranges).
    # Weights stored as (in_features, out_features): x @ W == x @ W_torch.T.
    k1, k2, k3, k4 = jax.random.split(key, 4)
    in1, hid, out = IN_FEATURES, HIDDEN, OUT_FEATURES
    bound1 = 1.0 / jnp.sqrt(in1)
    bound2 = 1.0 / jnp.sqrt(hid)
    w1 = jax.random.uniform(k1, (in1, hid), jnp.float32, -bound1, bound1)
    b1 = jax.random.uniform(k2, (1, hid), jnp.float32, -bound1, bound1)
    w2 = jax.random.uniform(k3, (hid, out), jnp.float32, -bound2, bound2)
    b2 = jax.random.uniform(k4, (1, out), jnp.float32, -bound2, bound2)
    return w1, b1, w2, b2


if __name__ == "__main__":
    key = jax.random.PRNGKey(0)
    kx, kp = jax.random.split(key)
    B = 8
    x = jax.random.normal(kx, (B, IN_FEATURES), jnp.float32)
    w1, b1, w2, b2 = init_params(kp)

    y = linear_dqn_net_forward(x, w1, b1, w2, b2)
    jax.block_until_ready(y)

    # Reference check in plain f32 JAX. Tolerance covers bf16 MXU inputs and the
    # approx (EUP) reciprocal in the sigmoid; outputs live in [0, 1].
    h_ref = jnp.maximum(x @ w1 + b1, 0.0)
    y_ref = jax.nn.sigmoid(h_ref @ w2 + b2)
    assert y.shape == (B, OUT_FEATURES)
    assert jnp.allclose(y, y_ref, atol=1.5e-2, rtol=1.5e-2), (
        float(jnp.max(jnp.abs(y - y_ref))))

    print("KERNEL_OK")
</pallas_src>

<mosaic_0001>
module attributes {stable_mosaic.version = 11 : i64} {
  func.func @mlp_kernel(%arg0: i32, %arg1: memref<8x11xf32, #tpu.memory_space<vmem>>, %arg2: memref<11x256xbf16, #tpu.memory_space<vmem>>, %arg3: memref<1x256xf32, #tpu.memory_space<vmem>>, %arg4: memref<256x8xbf16, #tpu.memory_space<vmem>>, %arg5: memref<1x8xf32, #tpu.memory_space<vmem>>, %arg6: memref<8x8xf32, #tpu.memory_space<vmem>>) attributes {dimension_semantics = [#tpu.dimension_semantics<parallel>], iteration_bounds = array<i64: 1>, scalar_prefetch = 0 : i64, scratch_operands = 0 : i64, tpu.core_type = #tpu.core_type<tc>, window_params = [{transform_indices = @transform_0, window_bounds = array<i64: 8, 11>}, {pipeline_mode = #tpu.pipeline_mode<synchronous>, transform_indices = @transform_1, window_bounds = array<i64: 11, 256>}, {pipeline_mode = #tpu.pipeline_mode<synchronous>, transform_indices = @transform_2, window_bounds = array<i64: 1, 256>}, {pipeline_mode = #tpu.pipeline_mode<synchronous>, transform_indices = @transform_3, window_bounds = array<i64: 256, 8>}, {pipeline_mode = #tpu.pipeline_mode<synchronous>, transform_indices = @transform_4, window_bounds = array<i64: 1, 8>}, {transform_indices = @transform_5, window_bounds = array<i64: 8, 8>}]} {
    %c0 = arith.constant 0 : index
    %c0_0 = arith.constant 0 : index
    %0 = vector.load %arg1[%c0, %c0_0] : memref<8x11xf32, #tpu.memory_space<vmem>>, vector<8x11xf32>
    %1 = arith.truncf %0 : vector<8x11xf32> to vector<8x11xbf16>
    %c0_1 = arith.constant 0 : index
    %c0_2 = arith.constant 0 : index
    %2 = vector.load %arg2[%c0_1, %c0_2] : memref<11x256xbf16, #tpu.memory_space<vmem>>, vector<11x256xbf16>
    %cst = arith.constant dense<0.000000e+00> : vector<8x256xf32>
    %3 = tpu.matmul %1, %2, %cst {dimension_numbers = #tpu.dot_dimension_numbers<[1], [0], [0], [1], [0, 0, 1, 1], [], []>} : vector<8x11xbf16>, vector<11x256xbf16>, vector<8x256xf32> -> vector<8x256xf32>
    %c0_3 = arith.constant 0 : index
    %c0_4 = arith.constant 0 : index
    %4 = vector.load %arg3[%c0_3, %c0_4] : memref<1x256xf32, #tpu.memory_space<vmem>>, vector<1x256xf32>
    %5 = vector.broadcast %4 : vector<1x256xf32> to vector<8x256xf32>
    %6 = arith.addf %3, %5 : vector<8x256xf32>
    %cst_5 = arith.constant 0.000000e+00 : f32
    %7 = vector.broadcast %cst_5 : f32 to vector<8x256xf32>
    %8 = arith.maximumf %6, %7 : vector<8x256xf32>
    %9 = arith.truncf %8 : vector<8x256xf32> to vector<8x256xbf16>
    %c0_6 = arith.constant 0 : index
    %c0_7 = arith.constant 0 : index
    %10 = vector.load %arg4[%c0_6, %c0_7] : memref<256x8xbf16, #tpu.memory_space<vmem>>, vector<256x8xbf16>
    %cst_8 = arith.constant dense<0.000000e+00> : vector<8x8xf32>
    %11 = tpu.matmul %9, %10, %cst_8 {dimension_numbers = #tpu.dot_dimension_numbers<[1], [0], [0], [1], [0, 0, 1, 1], [], []>} : vector<8x256xbf16>, vector<256x8xbf16>, vector<8x8xf32> -> vector<8x8xf32>
    %c0_9 = arith.constant 0 : index
    %c0_10 = arith.constant 0 : index
    %12 = vector.load %arg5[%c0_9, %c0_10] : memref<1x8xf32, #tpu.memory_space<vmem>>, vector<1x8xf32>
    %13 = vector.broadcast %12 : vector<1x8xf32> to vector<8x8xf32>
    %14 = arith.addf %11, %13 : vector<8x8xf32>
    %cst_11 = arith.constant -3.000000e+01 : f32
    %15 = vector.broadcast %cst_11 : f32 to vector<8x8xf32>
    %16 = arith.maximumf %14, %15 : vector<8x8xf32>
    %cst_12 = arith.constant 0.000000e+00 : f32
    %17 = vector.broadcast %cst_12 : f32 to vector<8x8xf32>
    %18 = arith.subf %17, %16 : vector<8x8xf32>
    %19 = math.exp %18 : vector<8x8xf32>
    %cst_13 = arith.constant 1.000000e+00 : f32
    %20 = vector.broadcast %cst_13 : f32 to vector<8x8xf32>
    %21 = arith.addf %20, %19 : vector<8x8xf32>
    %22 = tpu.reciprocal %21 {approx = true} : vector<8x8xf32> -> vector<8x8xf32>
    %c0_14 = arith.constant 0 : index
    %c0_15 = arith.constant 0 : index
    %23 = vector.load %arg6[%c0_14, %c0_15] : memref<8x8xf32, #tpu.memory_space<vmem>>, vector<8x8xf32>
    tpu.vector_store %arg6[%c0_14, %c0_15], %22 {strides = array<i32>} : memref<8x8xf32, #tpu.memory_space<vmem>>, vector<8x8xf32>,
    return
  }
  func.func @transform_0(%arg0: i32) -> (i32, i32) {
    %c0_i32 = arith.constant 0 : i32
    %c0_i32_0 = arith.constant 0 : i32
    return %arg0, %c0_i32 : i32, i32
  }
  func.func @transform_1(%arg0: i32) -> (i32, i32) {
    %c0_i32 = arith.constant 0 : i32
    %c0_i32_0 = arith.constant 0 : i32
    %c0_i32_1 = arith.constant 0 : i32
    return %c0_i32, %c0_i32_0 : i32, i32
  }
  func.func @transform_2(%arg0: i32) -> (i32, i32) {
    %c0_i32 = arith.constant 0 : i32
    %c0_i32_0 = arith.constant 0 : i32
    %c0_i32_1 = arith.constant 0 : i32
    return %c0_i32, %c0_i32_0 : i32, i32
  }
  func.func @transform_3(%arg0: i32) -> (i32, i32) {
    %c0_i32 = arith.constant 0 : i32
    %c0_i32_0 = arith.constant 0 : i32
    %c0_i32_1 = arith.constant 0 : i32
    return %c0_i32, %c0_i32_0 : i32, i32
  }
  func.func @transform_4(%arg0: i32) -> (i32, i32) {
    %c0_i32 = arith.constant 0 : i32
    %c0_i32_0 = arith.constant 0 : i32
    %c0_i32_1 = arith.constant 0 : i32
    return %c0_i32, %c0_i32_0 : i32, i32
  }
  func.func @transform_5(%arg0: i32) -> (i32, i32) {
    %c0_i32 = arith.constant 0 : i32
    %c0_i32_0 = arith.constant 0 : i32
    return %arg0, %c0_i32 : i32, i32
  }
}

</mosaic_0001>

<llo_original>
// kernel: tpu_custom_call.1
$region0: #{tpu_custom_call.1}
  #allocation0 [shape = 'u32[]', space=smem, size = 0x4, offset = 0x4, fixed_abs, tag = 'smem constant byte address 0x4 - core index']
  #allocation1 [shape = 'u32[144,128]{1,0:T(1,128)}', space=vmem, size = 0x12000, scoped, tag = 'internal scratch']
  %s0 = inlined_call_operand.vmem [shape: f32[8,11], index: 0, kind: input, shape index: {}]
  %s1 = inlined_call_operand.vmem [shape: bf16[11,256], index: 1, kind: input, shape index: {}]
  %s2 = inlined_call_operand.vmem [shape: f32[1,256], index: 2, kind: input, shape index: {}]
  %s3 = inlined_call_operand.vmem [shape: bf16[256,8], index: 3, kind: input, shape index: {}]
  %s4 = inlined_call_operand.vmem [shape: f32[1,8], index: 4, kind: input, shape index: {}]
  %s5 = inlined_call_operand.hbm [shape: f32[8,8], index: 5, kind: output, shape index: {}]
  %s6 = sld [smem:[#allocation0]]
  $region30: #{tpu_custom_call.1} parent=0
    _
  %s8 = ssub.s32 1, %s6
  %s9 = scalar_select 0, %s8, %s6
  $region1: #{tpu_custom_call.1} parent=0
    #allocation2 [shape = 'u8[4096]{0}', space=vmem, size = 0x1000, scoped, tag = 'output window, operand 0, single buffered']
    #allocation3 [shape = 's32[1]{0}', space=sflag, size = 0x4, scoped, tag = 'scoped memory for tpu_custom_call.1']
    %10 = vsyncpa [#allocation3], 0
    // Predicated region
    $region2: #{tpu_custom_call.1} parent=1 // pred_check
      _
    $region3: #{tpu_custom_call.1} parent=1 // pred_check_branch
      %12 = sbr.rel (0) target = $region5
    $region4: #{tpu_custom_call.1} parent=1 // pred_region
      _
    $region5: #{tpu_custom_call.1} parent=1 // pred_fallthru
      _
    // Predicated region
    $region6: #{tpu_custom_call.1} parent=1 // pred_check
      _
    $region7: #{tpu_custom_call.1} parent=1 // pred_check_branch
      %14 = sbr.rel (0) target = $region9
    $region8: #{tpu_custom_call.1} parent=1 // pred_region
      _
    $region9: #{tpu_custom_call.1} parent=1 // pred_fallthru
      _
    // Predicated region
    $region10: #{tpu_custom_call.1} parent=1 // pred_check
      _
    $region11: #{tpu_custom_call.1} parent=1 // pred_check_branch
      %16 = sbr.rel (0) target = $region13
    $region12: #{tpu_custom_call.1} parent=1 // pred_region
      _
    $region13: #{tpu_custom_call.1} parent=1 // pred_fallthru
      _
    // Predicated region
    $region14: #{tpu_custom_call.1} parent=1 // pred_check
      _
    $region15: #{tpu_custom_call.1} parent=1 // pred_check_branch
      %18 = sbr.rel (0) target = $region17
    $region16: #{tpu_custom_call.1} parent=1 // pred_region
      _
    $region17: #{tpu_custom_call.1} parent=1 // pred_fallthru
      _
    // Predicated region
    $region18: #{tpu_custom_call.1} parent=1 // pred_check
      _
    $region19: #{tpu_custom_call.1} parent=1 // pred_check_branch
      %20 = sbr.rel (0) target = $region21
    $region20: #{tpu_custom_call.1} parent=1 // pred_region
      _
    $region21: #{tpu_custom_call.1} parent=1 // pred_fallthru
      _
    %v22 = vld [vmem:[%s0] sm:$0xff]
    %v23 = vpack.c.bf16 %v22, %v22
    %v24 = vld [vmem:[%s1] sm:$0xff]
    %v25 = vld [vmem:[%s1 + $0x8] sm:$0x33]
    %v26 = vld [vmem:[%s2] sm:$0x3]
    %v28 = vlaneseq
    %v29 = vshrl.u32 %v28, 7
    %v30 = vsub.s32 0, %v29
    %v31 = vrot.slane %v26, %v30
    %v32 = vlaneseq
    %v33 = vshrl.u32 %v32, 7
    %v34 = vsub.s32 1, %v33
    %v35 = vrot.slane %v26, %v34
    %v40 = vunpack.c.l.b16 %v24
    %v41 = vunpack.c.h.b16 %v24
    %v42 = vunpack.c.l.b16 %v25
    %v43 = vunpack.c.h.b16 %v25
    %v44 = vpack.c.b16 %v42, %v40
    %v45 = vpack.c.b16 %v43, %v41
    %vm46 = vcmask 89088
    %v48 = vsel %vm46, %v23, 0
    %vm50 = vcmask 1044480
    %vm51 = vcmask 1045504
    %v52 = vsel %vm50, 4294967295, 65535
    %v53 = vsel %vm51, %v52, 0
    %v55 = vand.u32 %v44, %v53
    %v58 = vand.u32 %v45, %v53
    %60 = vmatprep.subr.bf16.mxu0 0
    %61 = vmatpush1.bf16.msra.mxu0 0
    %62 = vmatprep.subr.bf16.mxu0 0
    %63 = vmatpush1.bf16.msra.mxu0 0
    %64 = vmatprep.subr.bf16.mxu0 0
    %65 = vmatpush1.bf16.msra.mxu0 0
    %66 = vmatprep.subr.bf16.mxu0 0
    %67 = vmatpush1.bf16.msra.mxu0 0
    %68 = vmatprep.subr.bf16.mxu0 0
    %69 = vmatpush1.bf16.msra.mxu0 0
    %70 = vmatprep.subr.bf16.mxu0 0
    %71 = vmatpush1.bf16.msra.mxu0 0
    %72 = vmatprep.subr.bf16.mxu0 0
    %73 = vmatpush1.bf16.msra.mxu0 0
    %74 = vmatprep.subr.bf16.mxu0 %v58
    %75 = vmatpush1.bf16.msra.mxu0 %v55
    %76 = vmatprep.subr.bf16.mxu0 0
    %77 = vmatpush2.bf16.msra.mxu0 0
    %78 = vmatprep.subr.bf16.mxu0 0
    %79 = vmatpush2.bf16.msra.mxu0 0
    %80 = vmatprep.subr.bf16.mxu0 0
    %81 = vmatpush2.bf16.msra.mxu0 0
    %82 = vmatprep.subr.bf16.mxu0 0
    %83 = vmatpush2.bf16.msra.mxu0 0
    %84 = vmatprep.subr.bf16.mxu0 0
    %85 = vmatpush2.bf16.msra.mxu0 0
    %86 = vmatprep.subr.bf16.mxu0 0
    %87 = vmatpush2.bf16.msra.mxu0 0
    %88 = vmatprep.subr.bf16.mxu0 0
    %89 = vmatpush2.bf16.msra.mxu0 0
    %90 = vmatprep.subr.bf16.mxu0 0
    %91 = vmatpush2.bf16.msra.mxu0 0
    %92 = vmatprep.mubr.bf16.mxu0 0
    %93 = vmatmul.mubr.bf16.gmra.mxu0 %v48
    %v94 = vpop.f32.mrf.mxu0
    %v95 = vadd.f32 %v31, %v94
    %v96 = vpop.f32.mrf.mxu0
    %v97 = vadd.f32 %v35, %v96
    %v98 = vpop.f32.mrf.mxu0
    %v99 = vpop.f32.mrf.mxu0
    %100 = vdwg.mxu0
    %v101 = vmax.f32 %v95, 0.0
    %v102 = vmax.f32 %v97, 0.0
    %v103 = vpack.c.bf16 %v101, %v101
    %v104 = vpack.c.bf16 %v102, %v102
    %v105 = vld [vmem:[%s3] sm:$0xf]
    %v106 = vld [vmem:[%s3 + $0x4] sm:$0xf]
    %v107 = vld [vmem:[%s3 + $0x8] sm:$0xf]
    %v108 = vld [vmem:[%s3 + $0xc] sm:$0xf]
    %v109 = vld [vmem:[%s3 + $0x10] sm:$0xf]
    %v110 = vld [vmem:[%s3 + $0x14] sm:$0xf]
    %v111 = vld [vmem:[%s3 + $0x18] sm:$0xf]
    %v112 = vld [vmem:[%s3 + $0x1c] sm:$0xf]
    %v113 = vld [vmem:[%s3 + $0x20] sm:$0xf]
    %v114 = vld [vmem:[%s3 + $0x24] sm:$0xf]
    %v115 = vld [vmem:[%s3 + $0x28] sm:$0xf]
    %v116 = vld [vmem:[%s3 + $0x2c] sm:$0xf]
    %v117 = vld [vmem:[%s3 + $0x30] sm:$0xf]
    %v118 = vld [vmem:[%s3 + $0x34] sm:$0xf]
    %v119 = vld [vmem:[%s3 + $0x38] sm:$0xf]
    %v120 = vld [vmem:[%s3 + $0x3c] sm:$0xf]
    %v121 = vld [vmem:[%s3 + $0x40] sm:$0xf]
    %v122 = vld [vmem:[%s3 + $0x44] sm:$0xf]
    %v123 = vld [vmem:[%s3 + $0x48] sm:$0xf]
    %v124 = vld [vmem:[%s3 + $0x4c] sm:$0xf]
    %v125 = vld [vmem:[%s3 + $0x50] sm:$0xf]
    %v126 = vld [vmem:[%s3 + $0x54] sm:$0xf]
    %v127 = vld [vmem:[%s3 + $0x58] sm:$0xf]
    %v128 = vld [vmem:[%s3 + $0x5c] sm:$0xf]
    %v129 = vld [vmem:[%s3 + $0x60] sm:$0xf]
    %v130 = vld [vmem:[%s3 + $0x64] sm:$0xf]
    %v131 = vld [vmem:[%s3 + $0x68] sm:$0xf]
    %v132 = vld [vmem:[%s3 + $0x6c] sm:$0xf]
    %v133 = vld [vmem:[%s3 + $0x70] sm:$0xf]
    %v134 = vld [vmem:[%s3 + $0x74] sm:$0xf]
    %v135 = vld [vmem:[%s3 + $0x78] sm:$0xf]
    %v136 = vld [vmem:[%s3 + $0x7c] sm:$0xf]
    %v137 = vld [vmem:[%s4] sm:$0x1]
    %v139 = vlaneseq
    %v140 = vshrl.u32 %v139, 7
    %v141 = vsub.s32 0, %v140
    %v142 = vrot.slane %v137, %v141
    %v176 = vunpack.c.l.b16 %v105
    %v177 = vunpack.c.l.b16 %v106
    %v178 = vunpack.c.l.b16 %v107
    %v179 = vunpack.c.l.b16 %v108
    %v180 = vunpack.c.l.b16 %v109
    %v181 = vunpack.c.l.b16 %v110
    %v182 = vunpack.c.l.b16 %v111
    %v183 = vunpack.c.l.b16 %v112
    %v184 = vunpack.c.l.b16 %v113
    %v185 = vunpack.c.l.b16 %v114
    %v186 = vunpack.c.l.b16 %v115
    %v187 = vunpack.c.l.b16 %v116
    %v188 = vunpack.c.l.b16 %v117
    %v189 = vunpack.c.l.b16 %v118
    %v190 = vunpack.c.l.b16 %v119
    %v191 = vunpack.c.l.b16 %v120
    %v192 = vunpack.c.l.b16 %v121
    %v193 = vunpack.c.l.b16 %v122
    %v194 = vunpack.c.l.b16 %v123
    %v195 = vunpack.c.l.b16 %v124
    %v196 = vunpack.c.l.b16 %v125
    %v197 = vunpack.c.l.b16 %v126
    %v198 = vunpack.c.l.b16 %v127
    %v199 = vunpack.c.l.b16 %v128
    %v200 = vunpack.c.l.b16 %v129
    %v201 = vunpack.c.l.b16 %v130
    %v202 = vunpack.c.l.b16 %v131
    %v203 = vunpack.c.l.b16 %v132
    %v204 = vunpack.c.l.b16 %v133
    %v205 = vunpack.c.l.b16 %v134
    %v206 = vunpack.c.l.b16 %v135
    %v207 = vunpack.c.l.b16 %v136
    %v208 = vpack.c.b16 %v177, %v176
    %v209 = vpack.c.b16 %v179, %v178
    %v210 = vpack.c.b16 %v181, %v180
    %v211 = vpack.c.b16 %v183, %v182
    %v212 = vpack.c.b16 %v185, %v184
    %v213 = vpack.c.b16 %v187, %v186
    %v214 = vpack.c.b16 %v189, %v188
    %v215 = vpack.c.b16 %v191, %v190
    %v216 = vpack.c.b16 %v193, %v192
    %v217 = vpack.c.b16 %v195, %v194
    %v218 = vpack.c.b16 %v197, %v196
    %v219 = vpack.c.b16 %v199, %v198
    %v220 = vpack.c.b16 %v201, %v200
    %v221 = vpack.c.b16 %v203, %v202
    %v222 = vpack.c.b16 %v205, %v204
    %v223 = vpack.c.b16 %v207, %v206
    %240 = vmatprep.subr.bf16.mxu0 0
    %241 = vmatpush1.bf16.msra.mxu0 %v215
    %242 = vmatprep.subr.bf16.mxu0 0
    %243 = vmatpush1.bf16.msra.mxu0 %v214
    %244 = vmatprep.subr.bf16.mxu0 0
    %245 = vmatpush1.bf16.msra.mxu0 %v213
    %246 = vmatprep.subr.bf16.mxu0 0
    %247 = vmatpush1.bf16.msra.mxu0 %v212
    %248 = vmatprep.subr.bf16.mxu0 0
    %249 = vmatpush1.bf16.msra.mxu0 %v211
    %250 = vmatprep.subr.bf16.mxu0 0
    %251 = vmatpush1.bf16.msra.mxu0 %v210
    %252 = vmatprep.subr.bf16.mxu0 0
    %253 = vmatpush1.bf16.msra.mxu0 %v209
    %254 = vmatprep.subr.bf16.mxu0 0
    %255 = vmatpush1.bf16.msra.mxu0 %v208
    %256 = vmatprep.subr.bf16.mxu0 0
    %257 = vmatpush2.bf16.msra.mxu0 %v223
    %258 = vmatprep.subr.bf16.mxu0 0
    %259 = vmatpush2.bf16.msra.mxu0 %v222
    %260 = vmatprep.subr.bf16.mxu0 0
    %261 = vmatpush2.bf16.msra.mxu0 %v221
    %262 = vmatprep.subr.bf16.mxu0 0
    %263 = vmatpush2.bf16.msra.mxu0 %v220
    %264 = vmatprep.subr.bf16.mxu0 0
    %265 = vmatpush2.bf16.msra.mxu0 %v219
    %266 = vmatprep.subr.bf16.mxu0 0
    %267 = vmatpush2.bf16.msra.mxu0 %v218
    %268 = vmatprep.subr.bf16.mxu0 0
    %269 = vmatpush2.bf16.msra.mxu0 %v217
    %270 = vmatprep.subr.bf16.mxu0 0
    %271 = vmatpush2.bf16.msra.mxu0 %v216
    %272 = vmatprep.mubr.bf16.mxu0 %v104
    %273 = vmatmul.mubr.bf16.gmra.mxu0 %v103
    %v274 = vpop.f32.mrf.mxu0
    %v275 = vadd.f32 %v142, %v274
    %v276 = vpop.f32.mrf.mxu0
    %v277 = vpop.f32.mrf.mxu0
    %v278 = vpop.f32.mrf.mxu0
    %279 = vdwg.mxu0
    %v280 = vmax.f32 %v275, -30.0
    %v281 = vsub.f32 0.0, %v280
    %v282 = vmul.f32 %v281, 1.442695
    %v283 = vpow.pop %v282
    %v284 = vadd.f32 %v283, 1.0
    %v285 = vrcp.pop %v284
    %vm286 = vcmask 64512
    %287 = vst.msk [vmem:[#allocation2] sm:$0xff] %vm286, %v285
    // Predicated region
    $region22: #{tpu_custom_call.1} parent=1 // pred_check
      _
    $region23: #{tpu_custom_call.1} parent=1 // pred_check_branch
      %289 = sbr.rel (0) target = $region25
    $region24: #{tpu_custom_call.1} parent=1 // pred_region
      %s291 = ssub.s32 128, 128
      %292 = vsyncadd [#allocation3], %s291
      %s294 = sshll.u32 [#allocation2], 4
      %s295 = int_to_ptr.vmem [resolvable:$true] %s294
      %297 = dma.vmem_to_hbm [thread:$0]  %s295, 128, %s5, [#allocation3]
    $region25: #{tpu_custom_call.1} parent=1 // pred_fallthru
      _
    // Predicated region
    $region26: #{tpu_custom_call.1} parent=1 // pred_check
      _
    $region27: #{tpu_custom_call.1} parent=1 // pred_check_branch
      %299 = sbr.rel (0) target = $region29
    $region28: #{tpu_custom_call.1} parent=1 // pred_region
      %300 = dma.done [#allocation3], 128
    $region29: #{tpu_custom_call.1} parent=1 // pred_fallthru
      _
    %301 = vsyncpa [#allocation3], 1

</llo_original>
